<compile_context>
chip_gen: v7x
topology: tpu7x:2x2x1
jax: 0.10.0
libtpu: 0.0.40
codegen_flags: <defaults>
</compile_context>

<pallas_src>
import functools

import jax
import jax.numpy as jnp
from jax.experimental import pallas as pl
from jax.experimental.pallas import tpu as pltpu


def _round_up(x, m):
    return ((x + m - 1) // m) * m


def _vmem_capacity_bytes():
    try:
        return int(pltpu.get_tpu_info().vmem_capacity_bytes)
    except Exception:
        return 64 * 1024 * 1024  # conservative fallback (v7x per-core VMEM)


def prepare_refine_params(params, compute_dtype=jnp.bfloat16):
    """One-time prep: pad intermediate feature dims to 128 (lane-dense matmuls)
    and pre-cast weights to compute_dtype (biases stay f32 for the f32 adds).

    First/last feature dims are left at their natural size so x / y need no
    wrapper-side pad/slice (each of which would cost an extra activation-sized
    HBM round trip).
    """
    dims = [params[0][0].shape[0]] + [w.shape[1] for (w, _) in params]
    pdims = ([dims[0]]
             + [_round_up(d, 128) for d in dims[1:-1]]
             + [dims[-1]])
    prepared = []
    for i, (w, b) in enumerate(params):
        kin, kout = w.shape
        w_p = jnp.pad(w, ((0, pdims[i] - kin), (0, pdims[i + 1] - kout)))
        b_p = jnp.pad(b, (0, pdims[i + 1] - kout)).reshape(1, pdims[i + 1])
        prepared.append((w_p.astype(compute_dtype), b_p.astype(jnp.float32)))
    return prepared, dims, pdims


def _fused_refine_kernel(n_layers, compute_dtype, x_ref, *rest):
    # rest = (w0, b0, w1, b1, ..., o_ref)
    # x_ref: (tm, d0)   w_i: (pdims[i], pdims[i+1]) [compute_dtype, pre-cast]
    # b_i:   (1, pdims[i+1]) [f32]                  o_ref: (tm, d_out)
    o_ref = rest[-1]
    x = x_ref[...].astype(compute_dtype)
    for i in range(n_layers):  # static Python loop -> fully unrolled chain
        w = rest[2 * i][...]          # already compute_dtype: no per-step cast
        b = rest[2 * i + 1][...]      # f32
        acc = jnp.dot(x, w, preferred_element_type=jnp.float32) + b
        x = acc if i == n_layers - 1 else acc.astype(compute_dtype)
    o_ref[...] = x.astype(o_ref.dtype)


def fused_refine_forward(x, prepared, dims, pdims, *,
                         compute_dtype=jnp.bfloat16, block_rows=512):
    """y = (((x @ W0 + b0) @ W1 + b1) ...) fully fused in one pallas_call."""
    M, d0 = x.shape
    assert d0 == dims[0]
    n_layers = len(prepared)
    out_dim = dims[-1]

    # Row tile: respect the dtype sublane quantum (f32:8, bf16:16, int8:32).
    itemsize = jnp.dtype(x.dtype).itemsize
    sub = max(8, 32 // itemsize)
    tm = max(sub, min(block_rows, _round_up(M, sub)))
    # Guarantee >=2 grid steps when M allows it so both TensorCores of a v7x
    # chip get work (negligible extra per-step overhead on 1-TC chips).
    if pl.cdiv(M, tm) < 2 and M > sub:
        tm = _round_up(pl.cdiv(M, 2), sub)
    grid = (pl.cdiv(M, tm),)

    # Per-generation VMEM budget (75% of physical) + conservative estimate:
    # resident weights (x2 worst-case if single-buffering is unavailable),
    # double-buffered x / y tiles, and live f32/compute intermediates.
    resident = sum(int(w.size) * w.dtype.itemsize + int(b.size) * b.dtype.itemsize
                   for (w, b) in prepared)
    stream = 2 * tm * (d0 + out_dim) * itemsize
    interm = tm * max(pdims) * (4 + 4 + jnp.dtype(compute_dtype).itemsize)
    vmem_cap = int(0.75 * _vmem_capacity_bytes())
    est = 2 * resident + stream + interm + (2 << 20)
    if est > vmem_cap:
        # TODO(synk): K/N-tiled fallback with a VMEM f32 accumulator for refine
        # nets whose weight stack does not fit VMEM-resident.
        raise NotImplementedError(
            f"weight stack too large for the VMEM-resident fused path "
            f"(need ~{est >> 20} MiB, budget {vmem_cap >> 20} MiB)")

    kernel = functools.partial(_fused_refine_kernel, n_layers, compute_dtype)
    out_shape = jax.ShapeDtypeStruct((M, out_dim), x.dtype)
    out_specs = pl.BlockSpec((tm, out_dim), lambda i: (i, 0))
    flat_args = [x]
    for (w_p, b_p) in prepared:
        flat_args.append(w_p)
        flat_args.append(b_p)

    def _run(single_buffer_weights):
        in_specs = [pl.BlockSpec((tm, d0), lambda i: (i, 0))]
        for (w_p, b_p) in prepared:
            if single_buffer_weights:
                # Constant index_map -> the block never re-DMAs, so
                # double-buffering it is pure VMEM waste: single-buffer.
                w_spec = pl.BlockSpec(w_p.shape, lambda i: (0, 0),
                                      pipeline_mode=pl.Buffered(1))
                b_spec = pl.BlockSpec(b_p.shape, lambda i: (0, 0),
                                      pipeline_mode=pl.Buffered(1))
            else:
                w_spec = pl.BlockSpec(w_p.shape, lambda i: (0, 0))
                b_spec = pl.BlockSpec(b_p.shape, lambda i: (0, 0))
            in_specs.append(w_spec)
            in_specs.append(b_spec)
        return pl.pallas_call(
            kernel,
            out_shape=out_shape,
            grid_spec=pltpu.PrefetchScalarGridSpec(
                num_scalar_prefetch=0,
                grid=grid,
                in_specs=in_specs,
                out_specs=out_specs,
            ),
            compiler_params=pltpu.CompilerParams(
                dimension_semantics=("parallel",),
                vmem_limit_bytes=vmem_cap),
        )(*flat_args)

    if hasattr(pl, "Buffered"):
        try:
            return _run(True)
        except Exception:
            pass  # older/stricter JAX: fall back to default weight buffering
    return _run(False)


class SketchEmbeddingRefineNetworkPallas:
    """JAX/Pallas port of SketchEmbeddingRefineNetwork (ALBERT-style embedding
    refine): Linear(layers_dim[i], layers_dim[i+1]) chain, NO activation in
    between, fused into one Pallas kernel with VMEM-resident weights.

    compute_dtype=bf16 (default) is the MXU fast path (f32 accumulation);
    compute_dtype=jnp.float32 is the exact (slower, MXU-emulated) path.
    """

    def __init__(self, out_dim, layers_dim, key=None, dtype=jnp.float32,
                 compute_dtype=jnp.bfloat16):
        if key is None:
            key = jax.random.PRNGKey(0)
        dims = list(layers_dim) + [out_dim]
        self.compute_dtype = compute_dtype
        self.params = []
        for i in range(len(dims) - 1):
            fan_in, fan_out = dims[i], dims[i + 1]
            key, wk, bk = jax.random.split(key, 3)
            # nn.Linear-style init: uniform(-1/sqrt(fan_in), 1/sqrt(fan_in)).
            bound = 1.0 / (fan_in ** 0.5)
            w = jax.random.uniform(wk, (fan_in, fan_out), dtype=dtype,
                                   minval=-bound, maxval=bound)
            b = jax.random.uniform(bk, (fan_out,), dtype=dtype,
                                   minval=-bound, maxval=bound)
            self.params.append((w, b))
        # One-time pad + cast; nothing is re-cast per forward call / grid step.
        self.prepared, self.dims, self.pdims = prepare_refine_params(
            self.params, compute_dtype)

    def __call__(self, input_state):
        # input_state: [..., layers_dim[0]]
        lead_shape = input_state.shape[:-1]
        x = input_state.reshape(-1, input_state.shape[-1])
        y = fused_refine_forward(x, self.prepared, self.dims, self.pdims,
                                 compute_dtype=self.compute_dtype)
        return y.reshape(*lead_shape, y.shape[-1])


def _reference_forward(x, params):
    # Pure-JAX reference for correctness check.
    for w, b in params:
        x = jnp.dot(x, w, preferred_element_type=jnp.float32) + b
    return x


if __name__ == "__main__":
    key = jax.random.PRNGKey(0)
    # Small shapes consistent with the module: refine 32 -> 64 -> 128.
    batch, seq = 2, 8
    layers_dim = [32, 64]
    out_dim = 128

    k_in, k_param = jax.random.split(key)
    x = jax.random.normal(k_in, (batch, seq, layers_dim[0]), dtype=jnp.float32)

    # Exact path (f32 operands) -- tight tolerance vs. pure-JAX reference.
    net_f32 = SketchEmbeddingRefineNetworkPallas(
        out_dim, layers_dim, key=k_param, compute_dtype=jnp.float32)
    y_f32 = jax.block_until_ready(net_f32(x))

    y_ref = _reference_forward(x.reshape(-1, layers_dim[0]), net_f32.params)
    y_ref = y_ref.reshape(batch, seq, out_dim)
    assert y_f32.shape == (batch, seq, out_dim)
    assert jnp.allclose(y_f32, y_ref, atol=1e-4, rtol=1e-4)

    # Default fast path (bf16 MXU operands, f32 accumulate) -- looser tolerance.
    net_bf16 = SketchEmbeddingRefineNetworkPallas(
        out_dim, layers_dim, key=k_param)  # compute_dtype defaults to bf16
    y_bf16 = jax.block_until_ready(net_bf16(x))
    assert y_bf16.shape == (batch, seq, out_dim)
    assert jnp.allclose(y_bf16, y_ref, atol=5e-2, rtol=5e-2)

    print("KERNEL_OK")
</pallas_src>

<mosaic_0001>
module attributes {stable_mosaic.version = 11 : i64} {
  func.func @_fused_refine_kernel(%arg0: i32, %arg1: memref<8x32xf32, #tpu.memory_space<vmem>>, %arg2: memref<32x128xf32, #tpu.memory_space<vmem>>, %arg3: memref<1x128xf32, #tpu.memory_space<vmem>>, %arg4: memref<128x128xf32, #tpu.memory_space<vmem>>, %arg5: memref<1x128xf32, #tpu.memory_space<vmem>>, %arg6: memref<8x128xf32, #tpu.memory_space<vmem>>) attributes {dimension_semantics = [#tpu.dimension_semantics<parallel>], iteration_bounds = array<i64: 2>, scalar_prefetch = 0 : i64, scratch_operands = 0 : i64, tpu.core_type = #tpu.core_type<tc>, window_params = [{transform_indices = @transform_0, window_bounds = array<i64: 8, 32>}, {pipeline_mode = #tpu.pipeline_mode<synchronous>, transform_indices = @transform_1, window_bounds = array<i64: 32, 128>}, {pipeline_mode = #tpu.pipeline_mode<synchronous>, transform_indices = @transform_2, window_bounds = array<i64: 1, 128>}, {pipeline_mode = #tpu.pipeline_mode<synchronous>, transform_indices = @transform_3, window_bounds = array<i64: 128, 128>}, {pipeline_mode = #tpu.pipeline_mode<synchronous>, transform_indices = @transform_4, window_bounds = array<i64: 1, 128>}, {transform_indices = @transform_5, window_bounds = array<i64: 8, 128>}]} {
    %c0 = arith.constant 0 : index
    %c0_0 = arith.constant 0 : index
    %0 = vector.load %arg1[%c0, %c0_0] : memref<8x32xf32, #tpu.memory_space<vmem>>, vector<8x32xf32>
    %c0_1 = arith.constant 0 : index
    %c0_2 = arith.constant 0 : index
    %1 = vector.load %arg2[%c0_1, %c0_2] : memref<32x128xf32, #tpu.memory_space<vmem>>, vector<32x128xf32>
    %c0_3 = arith.constant 0 : index
    %c0_4 = arith.constant 0 : index
    %2 = vector.load %arg3[%c0_3, %c0_4] : memref<1x128xf32, #tpu.memory_space<vmem>>, vector<1x128xf32>
    %cst = arith.constant dense<0.000000e+00> : vector<8x128xf32>
    %3 = tpu.matmul %0, %1, %cst {dimension_numbers = #tpu.dot_dimension_numbers<[1], [0], [0], [1], [0, 0, 1, 1], [], []>} : vector<8x32xf32>, vector<32x128xf32>, vector<8x128xf32> -> vector<8x128xf32>
    %4 = vector.broadcast %2 : vector<1x128xf32> to vector<8x128xf32>
    %5 = arith.addf %3, %4 : vector<8x128xf32>
    %c0_5 = arith.constant 0 : index
    %c0_6 = arith.constant 0 : index
    %6 = vector.load %arg4[%c0_5, %c0_6] : memref<128x128xf32, #tpu.memory_space<vmem>>, vector<128x128xf32>
    %c0_7 = arith.constant 0 : index
    %c0_8 = arith.constant 0 : index
    %7 = vector.load %arg5[%c0_7, %c0_8] : memref<1x128xf32, #tpu.memory_space<vmem>>, vector<1x128xf32>
    %cst_9 = arith.constant dense<0.000000e+00> : vector<8x128xf32>
    %8 = tpu.matmul %5, %6, %cst_9 {dimension_numbers = #tpu.dot_dimension_numbers<[1], [0], [0], [1], [0, 0, 1, 1], [], []>} : vector<8x128xf32>, vector<128x128xf32>, vector<8x128xf32> -> vector<8x128xf32>
    %9 = vector.broadcast %7 : vector<1x128xf32> to vector<8x128xf32>
    %10 = arith.addf %8, %9 : vector<8x128xf32>
    %c0_10 = arith.constant 0 : index
    %c0_11 = arith.constant 0 : index
    %11 = vector.load %arg6[%c0_10, %c0_11] : memref<8x128xf32, #tpu.memory_space<vmem>>, vector<8x128xf32>
    tpu.vector_store %arg6[%c0_10, %c0_11], %10 {strides = array<i32>} : memref<8x128xf32, #tpu.memory_space<vmem>>, vector<8x128xf32>,
    return
  }
  func.func @transform_0(%arg0: i32) -> (i32, i32) {
    %c0_i32 = arith.constant 0 : i32
    %c0_i32_0 = arith.constant 0 : i32
    return %arg0, %c0_i32 : i32, i32
  }
  func.func @transform_1(%arg0: i32) -> (i32, i32) {
    %c0_i32 = arith.constant 0 : i32
    %c0_i32_0 = arith.constant 0 : i32
    %c0_i32_1 = arith.constant 0 : i32
    return %c0_i32, %c0_i32_0 : i32, i32
  }
  func.func @transform_2(%arg0: i32) -> (i32, i32) {
    %c0_i32 = arith.constant 0 : i32
    %c0_i32_0 = arith.constant 0 : i32
    %c0_i32_1 = arith.constant 0 : i32
    return %c0_i32, %c0_i32_0 : i32, i32
  }
  func.func @transform_3(%arg0: i32) -> (i32, i32) {
    %c0_i32 = arith.constant 0 : i32
    %c0_i32_0 = arith.constant 0 : i32
    %c0_i32_1 = arith.constant 0 : i32
    return %c0_i32, %c0_i32_0 : i32, i32
  }
  func.func @transform_4(%arg0: i32) -> (i32, i32) {
    %c0_i32 = arith.constant 0 : i32
    %c0_i32_0 = arith.constant 0 : i32
    %c0_i32_1 = arith.constant 0 : i32
    return %c0_i32, %c0_i32_0 : i32, i32
  }
  func.func @transform_5(%arg0: i32) -> (i32, i32) {
    %c0_i32 = arith.constant 0 : i32
    %c0_i32_0 = arith.constant 0 : i32
    return %arg0, %c0_i32 : i32, i32
  }
}

module attributes {stable_mosaic.version = 11 : i64} {
  func.func @_fused_refine_kernel(%arg0: i32, %arg1: memref<8x32xf32, #tpu.memory_space<vmem>>, %arg2: memref<32x128xf32, #tpu.memory_space<vmem>>, %arg3: memref<1x128xf32, #tpu.memory_space<vmem>>, %arg4: memref<128x128xf32, #tpu.memory_space<vmem>>, %arg5: memref<1x128xf32, #tpu.memory_space<vmem>>, %arg6: memref<8x128xf32, #tpu.memory_space<vmem>>) attributes {dimension_semantics = [#tpu.dimension_semantics<parallel>], iteration_bounds = array<i64: 2>, scalar_prefetch = 0 : i64, scratch_operands = 0 : i64, tpu.core_type = #tpu.core_type<tc>, window_params = [{transform_indices = @transform_0, window_bounds = array<i64: 8, 32>}, {pipeline_mode = #tpu.pipeline_mode<synchronous>, transform_indices = @transform_1, window_bounds = array<i64: 32, 128>}, {pipeline_mode = #tpu.pipeline_mode<synchronous>, transform_indices = @transform_2, window_bounds = array<i64: 1, 128>}, {pipeline_mode = #tpu.pipeline_mode<synchronous>, transform_indices = @transform_3, window_bounds = array<i64: 128, 128>}, {pipeline_mode = #tpu.pipeline_mode<synchronous>, transform_indices = @transform_4, window_bounds = array<i64: 1, 128>}, {transform_indices = @transform_5, window_bounds = array<i64: 8, 128>}]} {
    %c0 = arith.constant 0 : index
    %c0_0 = arith.constant 0 : index
    %0 = vector.load %arg1[%c0, %c0_0] : memref<8x32xf32, #tpu.memory_space<vmem>>, vector<8x32xf32>
    %c0_1 = arith.constant 0 : index
    %c0_2 = arith.constant 0 : index
    %1 = vector.load %arg2[%c0_1, %c0_2] : memref<32x128xf32, #tpu.memory_space<vmem>>, vector<32x128xf32>
    %c0_3 = arith.constant 0 : index
    %c0_4 = arith.constant 0 : index
    %2 = vector.load %arg3[%c0_3, %c0_4] : memref<1x128xf32, #tpu.memory_space<vmem>>, vector<1x128xf32>
    %cst = arith.constant dense<0.000000e+00> : vector<8x128xf32>
    %3 = tpu.matmul %0, %1, %cst {dimension_numbers = #tpu.dot_dimension_numbers<[1], [0], [0], [1], [0, 0, 1, 1], [], []>} : vector<8x32xf32>, vector<32x128xf32>, vector<8x128xf32> -> vector<8x128xf32>
    %4 = vector.broadcast %2 : vector<1x128xf32> to vector<8x128xf32>
    %5 = arith.addf %3, %4 : vector<8x128xf32>
    %c0_5 = arith.constant 0 : index
    %c0_6 = arith.constant 0 : index
    %6 = vector.load %arg4[%c0_5, %c0_6] : memref<128x128xf32, #tpu.memory_space<vmem>>, vector<128x128xf32>
    %c0_7 = arith.constant 0 : index
    %c0_8 = arith.constant 0 : index
    %7 = vector.load %arg5[%c0_7, %c0_8] : memref<1x128xf32, #tpu.memory_space<vmem>>, vector<1x128xf32>
    %cst_9 = arith.constant dense<0.000000e+00> : vector<8x128xf32>
    %8 = tpu.matmul %5, %6, %cst_9 {dimension_numbers = #tpu.dot_dimension_numbers<[1], [0], [0], [1], [0, 0, 1, 1], [], []>} : vector<8x128xf32>, vector<128x128xf32>, vector<8x128xf32> -> vector<8x128xf32>
    %9 = vector.broadcast %7 : vector<1x128xf32> to vector<8x128xf32>
    %10 = arith.addf %8, %9 : vector<8x128xf32>
    %c0_10 = arith.constant 0 : index
    %c0_11 = arith.constant 0 : index
    %11 = vector.load %arg6[%c0_10, %c0_11] : memref<8x128xf32, #tpu.memory_space<vmem>>, vector<8x128xf32>
    tpu.vector_store %arg6[%c0_10, %c0_11], %10 {strides = array<i32>} : memref<8x128xf32, #tpu.memory_space<vmem>>, vector<8x128xf32>,
    return
  }
  func.func @transform_0(%arg0: i32) -> (i32, i32) {
    %c0_i32 = arith.constant 0 : i32
    %c0_i32_0 = arith.constant 0 : i32
    return %arg0, %c0_i32 : i32, i32
  }
  func.func @transform_1(%arg0: i32) -> (i32, i32) {
    %c0_i32 = arith.constant 0 : i32
    %c0_i32_0 = arith.constant 0 : i32
    %c0_i32_1 = arith.constant 0 : i32
    return %c0_i32, %c0_i32_0 : i32, i32
  }
  func.func @transform_2(%arg0: i32) -> (i32, i32) {
    %c0_i32 = arith.constant 0 : i32
    %c0_i32_0 = arith.constant 0 : i32
    %c0_i32_1 = arith.constant 0 : i32
    return %c0_i32, %c0_i32_0 : i32, i32
  }
  func.func @transform_3(%arg0: i32) -> (i32, i32) {
    %c0_i32 = arith.constant 0 : i32
    %c0_i32_0 = arith.constant 0 : i32
    %c0_i32_1 = arith.constant 0 : i32
    return %c0_i32, %c0_i32_0 : i32, i32
  }
  func.func @transform_4(%arg0: i32) -> (i32, i32) {
    %c0_i32 = arith.constant 0 : i32
    %c0_i32_0 = arith.constant 0 : i32
    %c0_i32_1 = arith.constant 0 : i32
    return %c0_i32, %c0_i32_0 : i32, i32
  }
  func.func @transform_5(%arg0: i32) -> (i32, i32) {
    %c0_i32 = arith.constant 0 : i32
    %c0_i32_0 = arith.constant 0 : i32
    return %arg0, %c0_i32 : i32, i32
  }
}

</mosaic_0001>

<llo_original>
// kernel: tpu_custom_call.1
$region0: #{tpu_custom_call.1}
  #allocation0 [shape = 'u32[]', space=smem, size = 0x4, offset = 0x4, fixed_abs, tag = 'smem constant byte address 0x4 - core index']
  #allocation1 [shape = 'u32[144,128]{1,0:T(1,128)}', space=vmem, size = 0x12000, scoped, tag = 'internal scratch']
  %s0 = inlined_call_operand.hbm [shape: f32[16,32], index: 0, kind: input, shape index: {}]
  %s1 = inlined_call_operand.hbm [shape: f32[32,128], index: 1, kind: input, shape index: {}]
  %s2 = inlined_call_operand.vmem [shape: f32[1,128], index: 2, kind: input, shape index: {}]
  %s3 = inlined_call_operand.hbm [shape: f32[128,128], index: 3, kind: input, shape index: {}]
  %s4 = inlined_call_operand.vmem [shape: f32[1,128], index: 4, kind: input, shape index: {}]
  %s5 = inlined_call_operand.hbm [shape: f32[16,128], index: 5, kind: output, shape index: {}]
  %s6 = sld [smem:[#allocation0]]
  $region65: #{tpu_custom_call.1} parent=0
    _
  %s8 = ssub.s32 1, %s6
  %s9 = scalar_select 0, %s8, %s6
  $region1: #{tpu_custom_call.1} parent=0
    #allocation2 [shape = 'u8[8192]{0}', space=vmem, size = 0x2000, scoped, tag = 'input window, operand 0']
    #allocation3 [shape = 's32[2]{0}', space=sflag, size = 0x8, scoped, tag = 'scoped memory for tpu_custom_call.1']
    #allocation4 [shape = 's32[2]{0}', space=sflag, size = 0x8, scoped, tag = 'scoped memory for tpu_custom_call.1']
    #allocation5 [shape = 'u8[16384]{0}', space=vmem, size = 0x4000, scoped, tag = 'input window, operand 1, single buffered']
    #allocation6 [shape = 's32[1]{0}', space=sflag, size = 0x4, scoped, tag = 'scoped memory for tpu_custom_call.1']
    #allocation7 [shape = 'u8[65536]{0}', space=vmem, size = 0x10000, scoped, tag = 'input window, operand 3, single buffered']
    #allocation8 [shape = 'u8[8192]{0}', space=vmem, size = 0x2000, scoped, tag = 'output window, operand 0']
    %10 = vsyncpa [#allocation3], 0
    %s11 = scalar_lea.sflag [#allocation3], 1
    %12 = vsyncpa %s11, 0
    %13 = vsyncpa [#allocation6], 0
    %14 = vsyncpa [#allocation4], 0
    %s15 = scalar_lea.sflag [#allocation4], 1
    %16 = vsyncpa %s15, 0
    loop: start=0, step=1, limit=4
    $region2: #{tpu_custom_call.1} parent=1 // loop_pre_header
      _
    $region3: #{tpu_custom_call.1} parent=1 // loop_header
      %s18 = sphi 0, %s22
      %p19 = scmp.ge.s32.totalorder %s18, 4
      %s28 = sphi 0, %s30
      %s31 = sphi 0, %s28
      %s32 = sphi 0, %s31
      %s48 = sphi 0, %s32
      %s52 = sphi 0, %s52
      %s54 = sphi 0, %s52
      %s55 = sphi 0, %s54
      %s69 = sphi 0, %s55
      %s73 = sphi 0, %s73
      %s75 = sphi 0, %s73
      %s76 = sphi 0, %s75
      %s90 = sphi 0, %s76
      %s94 = sphi 0, %s94
      %s96 = sphi 0, %s94
      %s97 = sphi 0, %s96
      %s111 = sphi 0, %s97
      %s115 = sphi 0, %s115
      %s117 = sphi 0, %s115
      %s118 = sphi 0, %s117
      %s132 = sphi 0, %s118
      %s138 = sphi 0, %s140
      %s141 = sphi 0, %s138
      %s142 = sphi 0, %s141
      %s158 = sphi 0, %s142
    $region4: #{tpu_custom_call.1} parent=1 // loop_header_branch
      %21 = sbr.rel (%p19) target = $region8
    $region5: #{tpu_custom_call.1} parent=1 // loop_body
      %s23 = ssub.s32 %s18, 1
      %s24 = ssub.s32 %s18, 2
      %s25 = sadd.s32 %s18, 1
      %s26 = ssub.s32 %s18, %s25
      %p27 = scmp.eq.s32.totalorder %s26, 0
      %s29 = sadd.s32 %s28, 1
      %s30 = scalar_select %p27, %s28, %s29
      %p33 = pneg %p27
      %p34 = scmp.eq.s32.totalorder %s18, 1
      %p35 = por %p33, %p34
      %p36 = scmp.ne.s32.totalorder %s28, %s31
      %p37 = scmp.eq.s32.totalorder %s18, 0
      %p38 = por %p36, %p37
      %p39 = scmp.ne.s32.totalorder %s28, %s31
      %p40 = scmp.eq.s32.totalorder %s23, 1
      %p41 = por %p39, %p40
      %p42 = scmp.ne.s32.totalorder %s31, %s32
      %p43 = scmp.eq.s32.totalorder %s23, 0
      %p44 = por %p42, %p43
      %p45 = scmp.ne.s32.totalorder %s31, %s32
      %p46 = scmp.eq.s32.totalorder %s24, 1
      %p47 = por %p45, %p46
      %p49 = scmp.ne.s32.totalorder %s32, %s48
      %p50 = scmp.eq.s32.totalorder %s24, 0
      %p51 = por %p49, %p50
      %s53 = sadd.s32 %s52, 1
      %p56 = scmp.eq.s32.totalorder %s18, 1
      %p57 = scmp.ne.s32.totalorder %s52, %s54
      %p58 = scmp.eq.s32.totalorder %s18, 0
      %p59 = por %p57, %p58
      %p60 = scmp.ne.s32.totalorder %s52, %s54
      %p61 = scmp.eq.s32.totalorder %s23, 1
      %p62 = por %p60, %p61
      %p63 = scmp.ne.s32.totalorder %s54, %s55
      %p64 = scmp.eq.s32.totalorder %s23, 0
      %p65 = por %p63, %p64
      %p66 = scmp.ne.s32.totalorder %s54, %s55
      %p67 = scmp.eq.s32.totalorder %s24, 1
      %p68 = por %p66, %p67
      %p70 = scmp.ne.s32.totalorder %s55, %s69
      %p71 = scmp.eq.s32.totalorder %s24, 0
      %p72 = por %p70, %p71
      %s74 = sadd.s32 %s73, 1
      %p77 = scmp.eq.s32.totalorder %s18, 1
      %p78 = scmp.ne.s32.totalorder %s73, %s75
      %p79 = scmp.eq.s32.totalorder %s18, 0
      %p80 = por %p78, %p79
      %p81 = scmp.ne.s32.totalorder %s73, %s75
      %p82 = scmp.eq.s32.totalorder %s23, 1
      %p83 = por %p81, %p82
      %p84 = scmp.ne.s32.totalorder %s75, %s76
      %p85 = scmp.eq.s32.totalorder %s23, 0
      %p86 = por %p84, %p85
      %p87 = scmp.ne.s32.totalorder %s75, %s76
      %p88 = scmp.eq.s32.totalorder %s24, 1
      %p89 = por %p87, %p88
      %p91 = scmp.ne.s32.totalorder %s76, %s90
      %p92 = scmp.eq.s32.totalorder %s24, 0
      %p93 = por %p91, %p92
      %s95 = sadd.s32 %s94, 1
      %p98 = scmp.eq.s32.totalorder %s18, 1
      %p99 = scmp.ne.s32.totalorder %s94, %s96
      %p100 = scmp.eq.s32.totalorder %s18, 0
      %p101 = por %p99, %p100
      %p102 = scmp.ne.s32.totalorder %s94, %s96
      %p103 = scmp.eq.s32.totalorder %s23, 1
      %p104 = por %p102, %p103
      %p105 = scmp.ne.s32.totalorder %s96, %s97
      %p106 = scmp.eq.s32.totalorder %s23, 0
      %p107 = por %p105, %p106
      %p108 = scmp.ne.s32.totalorder %s96, %s97
      %p109 = scmp.eq.s32.totalorder %s24, 1
      %p110 = por %p108, %p109
      %p112 = scmp.ne.s32.totalorder %s97, %s111
      %p113 = scmp.eq.s32.totalorder %s24, 0
      %p114 = por %p112, %p113
      %s116 = sadd.s32 %s115, 1
      %p119 = scmp.eq.s32.totalorder %s18, 1
      %p120 = scmp.ne.s32.totalorder %s115, %s117
      %p121 = scmp.eq.s32.totalorder %s18, 0
      %p122 = por %p120, %p121
      %p123 = scmp.ne.s32.totalorder %s115, %s117
      %p124 = scmp.eq.s32.totalorder %s23, 1
      %p125 = por %p123, %p124
      %p126 = scmp.ne.s32.totalorder %s117, %s118
      %p127 = scmp.eq.s32.totalorder %s23, 0
      %p128 = por %p126, %p127
      %p129 = scmp.ne.s32.totalorder %s117, %s118
      %p130 = scmp.eq.s32.totalorder %s24, 1
      %p131 = por %p129, %p130
      %p133 = scmp.ne.s32.totalorder %s118, %s132
      %p134 = scmp.eq.s32.totalorder %s24, 0
      %p135 = por %p133, %p134
      %s136 = ssub.s32 %s18, %s25
      %p137 = scmp.eq.s32.totalorder %s136, 0
      %s139 = sadd.s32 %s138, 1
      %s140 = scalar_select %p137, %s138, %s139
      %p143 = pneg %p137
      %p144 = scmp.eq.s32.totalorder %s18, 1
      %p145 = por %p143, %p144
      %p146 = scmp.ne.s32.totalorder %s138, %s141
      %p147 = scmp.eq.s32.totalorder %s18, 0
      %p148 = por %p146, %p147
      %p149 = scmp.ne.s32.totalorder %s138, %s141
      %p150 = scmp.eq.s32.totalorder %s23, 1
      %p151 = por %p149, %p150
      %p152 = scmp.ne.s32.totalorder %s141, %s142
      %p153 = scmp.eq.s32.totalorder %s23, 0
      %p154 = por %p152, %p153
      %p155 = scmp.ne.s32.totalorder %s141, %s142
      %p156 = scmp.eq.s32.totalorder %s24, 1
      %p157 = por %p155, %p156
      %p159 = scmp.ne.s32.totalorder %s142, %s158
      %p160 = scmp.eq.s32.totalorder %s24, 0
      %p161 = por %p159, %p160
      %p162 = scmp.le.s32.totalorder 1, %s18
      %p163 = scmp.lt.s32.totalorder %s18, 3
      %p164 = pnand %p162, %p163
      %p165 = pneg %p164
      // Predicated region
      $region9: #{tpu_custom_call.1} parent=5 // pred_check
        _
      $region10: #{tpu_custom_call.1} parent=5 // pred_check_branch
        %167 = sbr.rel (%p164) target = $region12
      $region11: #{tpu_custom_call.1} parent=5 // pred_region
        %s168 = ssub.s32 %s18, 1
        // Predicated region
        $region13: #{tpu_custom_call.1} parent=11 // pred_check
          %p169 = pneg %p65
        $region14: #{tpu_custom_call.1} parent=11 // pred_check_branch
          %171 = sbr.rel (%p169) target = $region16
        $region15: #{tpu_custom_call.1} parent=11 // pred_region
          %s173 = ssub.s32 512, 512
          %174 = vsyncadd [#allocation6], %s173
          %s175 = sshll.u32 [#allocation5], 4
          %s176 = int_to_ptr.vmem [resolvable:$true] %s175
          %181 = dma.hbm_to_vmem [thread:$0]  %s1, 512, %s176, [#allocation6], 128, 128, 8
        $region16: #{tpu_custom_call.1} parent=11 // pred_fallthru
          _
        // Predicated region
        $region17: #{tpu_custom_call.1} parent=11 // pred_check
          %p182 = pneg %p86
        $region18: #{tpu_custom_call.1} parent=11 // pred_check_branch
          %184 = sbr.rel (%p182) target = $region20
        $region19: #{tpu_custom_call.1} parent=11 // pred_region
          _
        $region20: #{tpu_custom_call.1} parent=11 // pred_fallthru
          _
        // Predicated region
        $region21: #{tpu_custom_call.1} parent=11 // pred_check
          %p185 = pneg %p107
        $region22: #{tpu_custom_call.1} parent=11 // pred_check_branch
          %187 = sbr.rel (%p185) target = $region24
        $region23: #{tpu_custom_call.1} parent=11 // pred_region
          %s189 = ssub.s32 2048, 2048
          %190 = vsyncadd [#allocation6], %s189
          %s191 = sshll.u32 [#allocation7], 4
          %s192 = int_to_ptr.vmem [resolvable:$true] %s191
          %197 = dma.hbm_to_vmem [thread:$0]  %s3, 2048, %s192, [#allocation6], 128, 128, 8
        $region24: #{tpu_custom_call.1} parent=11 // pred_fallthru
          _
        // Predicated region
        $region25: #{tpu_custom_call.1} parent=11 // pred_check
          %p198 = pneg %p128
        $region26: #{tpu_custom_call.1} parent=11 // pred_check_branch
          %200 = sbr.rel (%p198) target = $region28
        $region27: #{tpu_custom_call.1} parent=11 // pred_region
          _
        $region28: #{tpu_custom_call.1} parent=11 // pred_fallthru
          _
      $region12: #{tpu_custom_call.1} parent=5 // pred_fallthru
        _
      %p201 = scmp.lt.s32.totalorder %s18, 2
      // Predicated region
      $region29: #{tpu_custom_call.1} parent=5 // pred_check
        %p202 = pneg %p201
      $region30: #{tpu_custom_call.1} parent=5 // pred_check_branch
        %204 = sbr.rel (%p202) target = $region32
      $region31: #{tpu_custom_call.1} parent=5 // pred_region
        // Predicated region
        $region33: #{tpu_custom_call.1} parent=31 // pred_check
          %p205 = pneg %p38
        $region34: #{tpu_custom_call.1} parent=31 // pred_check_branch
          %207 = sbr.rel (%p205) target = $region36
        $region35: #{tpu_custom_call.1} parent=31 // pred_region
          %s208 = sand.u32 %s28, 1
          %s209 = scalar_lea.sflag [#allocation3], %s208
          %s210 = sand.u32 %s28, 1
          %s211 = smul.addr %s210, 8
          %s212 = scalar_lea.vmem [#allocation2], %s211
          %s214 = ssub.s32 128, 128
          %215 = vsyncadd %s209, %s214
          %s216 = smul.addr %s18, 128
          %s217 = scalar_lea.hbm %s0, %s216
          %s219 = sshll.u32 %s212, 4
          %s220 = int_to_ptr.vmem [resolvable:$true] %s219
          %222 = dma.hbm_to_vmem [thread:$0]  %s217, 128, %s220, %s209
        $region36: #{tpu_custom_call.1} parent=31 // pred_fallthru
          _
      $region32: #{tpu_custom_call.1} parent=5 // pred_fallthru
        _
      %p223 = scmp.le.s32.totalorder 1, %s18
      %p224 = scmp.lt.s32.totalorder %s18, 3
      %p225 = pnand %p223, %p224
      %p226 = pneg %p225
      // Predicated region
      $region37: #{tpu_custom_call.1} parent=5 // pred_check
        _
      $region38: #{tpu_custom_call.1} parent=5 // pred_check_branch
        %228 = sbr.rel (%p225) target = $region40
      $region39: #{tpu_custom_call.1} parent=5 // pred_region
        %s229 = ssub.s32 %s18, 1
        %s230 = sand.u32 %s31, 1
        %s231 = scalar_lea.sflag [#allocation3], %s230
        %s232 = sand.u32 %s31, 1
        %s233 = smul.addr %s232, 8
        %s234 = scalar_lea.vmem [#allocation2], %s233
        // Predicated region
        $region41: #{tpu_custom_call.1} parent=39 // pred_check
          %p235 = pneg %p44
        $region42: #{tpu_custom_call.1} parent=39 // pred_check_branch
          %237 = sbr.rel (%p235) target = $region44
        $region43: #{tpu_custom_call.1} parent=39 // pred_region
          %238 = dma.done %s231, 128
        $region44: #{tpu_custom_call.1} parent=39 // pred_fallthru
          _
        // Predicated region
        $region45: #{tpu_custom_call.1} parent=39 // pred_check
          %p239 = pneg %p65
        $region46: #{tpu_custom_call.1} parent=39 // pred_check_branch
          %241 = sbr.rel (%p239) target = $region48
        $region47: #{tpu_custom_call.1} parent=39 // pred_region
          %242 = dma.done [#allocation6], 512
        $region48: #{tpu_custom_call.1} parent=39 // pred_fallthru
          _
        // Predicated region
        $region49: #{tpu_custom_call.1} parent=39 // pred_check
          %p243 = pneg %p107
        $region50: #{tpu_custom_call.1} parent=39 // pred_check_branch
          %245 = sbr.rel (%p243) target = $region52
        $region51: #{tpu_custom_call.1} parent=39 // pred_region
          %246 = dma.done [#allocation6], 2048
        $region52: #{tpu_custom_call.1} parent=39 // pred_fallthru
          _
        %s247 = sand.u32 %s31, 1
        %s248 = scalar_lea.sflag [#allocation3], %s247
        %s249 = sand.u32 %s31, 1
        %s250 = smul.addr %s249, 8
        %s251 = scalar_lea.vmem [#allocation2], %s250
        %p252 = pneg %p44
        %p253 = pneg %p41
        %p254 = pneg %p65
        %p255 = pneg %p62
        %p256 = pneg %p86
        %p257 = pneg %p83
        %p258 = pneg %p107
        %p259 = pneg %p104
        %p260 = pneg %p128
        %p261 = pneg %p125
        %p262 = pneg %p154
        %p263 = pneg %p151
        %s264 = sand.u32 %s141, 1
        %s265 = scalar_lea.sflag [#allocation4], %s264
        %s266 = sand.u32 %s141, 1
        %s267 = smul.addr %s266, 8
        %s268 = scalar_lea.vmem [#allocation8], %s267
        %v269 = vld [vmem:[%s234] sm:$0xff]
        %v270 = vld [vmem:[#allocation5] sm:$0xff]
        %v271 = vld [vmem:[#allocation5 + $0x8] sm:$0xff]
        %v272 = vld [vmem:[#allocation5 + $0x10] sm:$0xff]
        %v273 = vld [vmem:[#allocation5 + $0x18] sm:$0xff]
        %v274 = vld [vmem:[%s2] sm:$0x1]
        %v276 = vlaneseq
        %v277 = vshrl.u32 %v276, 7
        %v278 = vsub.s32 0, %v277
        %v279 = vrot.slane %v274, %v278
        %vm281 = vcmask 261120
        %v283 = vsel %vm281, %v269, 0
        %285 = vmatprep.subr.mxu0 0.0
        %286 = vmatpush1.msra.mxu0 %v270
        %287 = vmatprep.subr.mxu0 0.0
        %288 = vmatpush1.msra.mxu0 %v271
        %289 = vmatprep.subr.mxu0 0.0
        %290 = vmatpush1.msra.mxu0 %v272
        %291 = vmatprep.subr.mxu0 0.0
        %292 = vmatpush1.msra.mxu0 %v273
        %293 = vmatprep.subr.mxu0 0.0
        %294 = vmatpush1.msra.mxu0 0.0
        %295 = vmatprep.subr.mxu0 0.0
        %296 = vmatpush1.msra.mxu0 0.0
        %297 = vmatprep.subr.mxu0 0.0
        %298 = vmatpush1.msra.mxu0 0.0
        %299 = vmatprep.subr.mxu0 0.0
        %300 = vmatpush1.msra.mxu0 0.0
        %301 = vmatprep.subr.mxu0 0.0
        %302 = vmatpush1.msra.mxu0 0.0
        %303 = vmatprep.subr.mxu0 0.0
        %304 = vmatpush1.msra.mxu0 0.0
        %305 = vmatprep.subr.mxu0 0.0
        %306 = vmatpush1.msra.mxu0 0.0
        %307 = vmatprep.subr.mxu0 0.0
        %308 = vmatpush1.msra.mxu0 0.0
        %309 = vmatprep.subr.mxu0 0.0
        %310 = vmatpush1.msra.mxu0 0.0
        %311 = vmatprep.subr.mxu0 0.0
        %312 = vmatpush1.msra.mxu0 0.0
        %313 = vmatprep.subr.mxu0 0.0
        %314 = vmatpush1.msra.mxu0 0.0
        %315 = vmatprep.subr.mxu0 0.0
        %316 = vmatpush1.msra.mxu0 0.0
        %317 = vmatprep.subr.mxu0 0.0
        %318 = vmatpush1.msra.mxu0 0.0
        %319 = vmatprep.subr.mxu0 0.0
        %320 = vmatpush1.msra.mxu0 0.0
        %321 = vmatprep.subr.mxu0 0.0
        %322 = vmatpush1.msra.mxu0 0.0
        %323 = vmatprep.subr.mxu0 0.0
        %324 = vmatpush1.msra.mxu0 0.0
        %325 = vmatprep.subr.mxu0 0.0
        %326 = vmatpush1.msra.mxu0 0.0
        %327 = vmatprep.subr.mxu0 0.0
        %328 = vmatpush1.msra.mxu0 0.0
        %329 = vmatprep.subr.mxu0 0.0
        %330 = vmatpush1.msra.mxu0 0.0
        %331 = vmatprep.subr.mxu0 0.0
        %332 = vmatpush1.msra.mxu0 0.0
        %333 = vmatprep.subr.mxu0 0.0
        %334 = vmatpush1.msra.mxu0 0.0
        %335 = vmatprep.subr.mxu0 0.0
        %336 = vmatpush1.msra.mxu0 0.0
        %337 = vmatprep.subr.mxu0 0.0
        %338 = vmatpush1.msra.mxu0 0.0
        %339 = vmatprep.subr.mxu0 0.0
        %340 = vmatpush1.msra.mxu0 0.0
        %341 = vmatprep.subr.mxu0 0.0
        %342 = vmatpush1.msra.mxu0 0.0
        %343 = vmatprep.subr.mxu0 0.0
        %344 = vmatpush1.msra.mxu0 0.0
        %345 = vmatprep.subr.mxu0 0.0
        %346 = vmatpush1.msra.mxu0 0.0
        %347 = vmatprep.subr.mxu0 0.0
        %348 = vmatpush1.msra.mxu0 0.0
        %349 = vmatprep.mubr.f32.mxu0 0.0
        %350 = vmatmul.mubr.f32.gmra.mrb[0].mxu0 %v283
        %v351 = vpop.f32.mrb[0].mxu0
        %v352 = vadd.f32 %v279, %v351
        %v353 = vpop.f32.mrb[0].mxu0
        %354 = vdwg.mxu0
        %v355 = vld [vmem:[#allocation7] sm:$0xff]
        %v356 = vld [vmem:[#allocation7 + $0x8] sm:$0xff]
        %v357 = vld [vmem:[#allocation7 + $0x10] sm:$0xff]
        %v358 = vld [vmem:[#allocation7 + $0x18] sm:$0xff]
        %v359 = vld [vmem:[#allocation7 + $0x20] sm:$0xff]
        %v360 = vld [vmem:[#allocation7 + $0x28] sm:$0xff]
        %v361 = vld [vmem:[#allocation7 + $0x30] sm:$0xff]
        %v362 = vld [vmem:[#allocation7 + $0x38] sm:$0xff]
        %v363 = vld [vmem:[#allocation7 + $0x40] sm:$0xff]
        %v364 = vld [vmem:[#allocation7 + $0x48] sm:$0xff]
        %v365 = vld [vmem:[#allocation7 + $0x50] sm:$0xff]
        %v366 = vld [vmem:[#allocation7 + $0x58] sm:$0xff]
        %v367 = vld [vmem:[#allocation7 + $0x60] sm:$0xff]
        %v368 = vld [vmem:[#allocation7 + $0x68] sm:$0xff]
        %v369 = vld [vmem:[#allocation7 + $0x70] sm:$0xff]
        %v370 = vld [vmem:[#allocation7 + $0x78] sm:$0xff]
        %v371 = vld [vmem:[%s4] sm:$0x1]
        %v373 = vlaneseq
        %v374 = vshrl.u32 %v373, 7
        %v375 = vsub.s32 0, %v374
        %v376 = vrot.slane %v371, %v375
        %378 = vmatprep.subr.mxu0 0.0
        %379 = vmatpush1.msra.mxu0 %v355
        %380 = vmatprep.subr.mxu0 0.0
        %381 = vmatpush1.msra.mxu0 %v356
        %382 = vmatprep.subr.mxu0 0.0
        %383 = vmatpush1.msra.mxu0 %v357
        %384 = vmatprep.subr.mxu0 0.0
        %385 = vmatpush1.msra.mxu0 %v358
        %386 = vmatprep.subr.mxu0 0.0
        %387 = vmatpush1.msra.mxu0 %v359
        %388 = vmatprep.subr.mxu0 0.0
        %389 = vmatpush1.msra.mxu0 %v360
        %390 = vmatprep.subr.mxu0 0.0
        %391 = vmatpush1.msra.mxu0 %v361
        %392 = vmatprep.subr.mxu0 0.0
        %393 = vmatpush1.msra.mxu0 %v362
        %394 = vmatprep.subr.mxu0 0.0
        %395 = vmatpush1.msra.mxu0 %v363
        %396 = vmatprep.subr.mxu0 0.0
        %397 = vmatpush1.msra.mxu0 %v364
        %398 = vmatprep.subr.mxu0 0.0
        %399 = vmatpush1.msra.mxu0 %v365
        %400 = vmatprep.subr.mxu0 0.0
        %401 = vmatpush1.msra.mxu0 %v366
        %402 = vmatprep.subr.mxu0 0.0
        %403 = vmatpush1.msra.mxu0 %v367
        %404 = vmatprep.subr.mxu0 0.0
        %405 = vmatpush1.msra.mxu0 %v368
        %406 = vmatprep.subr.mxu0 0.0
        %407 = vmatpush1.msra.mxu0 %v369
        %408 = vmatprep.subr.mxu0 0.0
        %409 = vmatpush1.msra.mxu0 %v370
        %410 = vmatprep.subr.mxu0 0.0
        %411 = vmatpush1.msra.mxu0 0.0
        %412 = vmatprep.subr.mxu0 0.0
        %413 = vmatpush1.msra.mxu0 0.0
        %414 = vmatprep.subr.mxu0 0.0
        %415 = vmatpush1.msra.mxu0 0.0
        %416 = vmatprep.subr.mxu0 0.0
        %417 = vmatpush1.msra.mxu0 0.0
        %418 = vmatprep.subr.mxu0 0.0
        %419 = vmatpush1.msra.mxu0 0.0
        %420 = vmatprep.subr.mxu0 0.0
        %421 = vmatpush1.msra.mxu0 0.0
        %422 = vmatprep.subr.mxu0 0.0
        %423 = vmatpush1.msra.mxu0 0.0
        %424 = vmatprep.subr.mxu0 0.0
        %425 = vmatpush1.msra.mxu0 0.0
        %426 = vmatprep.subr.mxu0 0.0
        %427 = vmatpush1.msra.mxu0 0.0
        %428 = vmatprep.subr.mxu0 0.0
        %429 = vmatpush1.msra.mxu0 0.0
        %430 = vmatprep.subr.mxu0 0.0
        %431 = vmatpush1.msra.mxu0 0.0
        %432 = vmatprep.subr.mxu0 0.0
        %433 = vmatpush1.msra.mxu0 0.0
        %434 = vmatprep.subr.mxu0 0.0
        %435 = vmatpush1.msra.mxu0 0.0
        %436 = vmatprep.subr.mxu0 0.0
        %437 = vmatpush1.msra.mxu0 0.0
        %438 = vmatprep.subr.mxu0 0.0
        %439 = vmatpush1.msra.mxu0 0.0
        %440 = vmatprep.subr.mxu0 0.0
        %441 = vmatpush1.msra.mxu0 0.0
        %442 = vmatprep.mubr.f32.mxu0 0.0
        %443 = vmatmul.mubr.f32.gmra.mrb[0].mxu0 %v352
        %v444 = vpop.f32.mrb[0].mxu0
        %v445 = vadd.f32 %v376, %v444
        %v446 = vpop.f32.mrb[0].mxu0
        %447 = vdwg.mxu0
        %448 = vst [vmem:[%s268] sm:$0xff] %v445
        %s449 = sand.u32 %s141, 1
        %s450 = scalar_lea.sflag [#allocation4], %s449
        %s451 = sand.u32 %s141, 1
        %s452 = smul.addr %s451, 8
        %s453 = scalar_lea.vmem [#allocation8], %s452
        // Predicated region
        $region53: #{tpu_custom_call.1} parent=39 // pred_check
          %p454 = pneg %p151
        $region54: #{tpu_custom_call.1} parent=39 // pred_check_branch
          %456 = sbr.rel (%p454) target = $region56
        $region55: #{tpu_custom_call.1} parent=39 // pred_region
          %s458 = ssub.s32 128, 128
          %459 = vsyncadd %s450, %s458
          %s460 = smul.addr %s23, 128
          %s461 = scalar_lea.hbm %s5, %s460
          %s463 = sshll.u32 %s453, 4
          %s464 = int_to_ptr.vmem [resolvable:$true] %s463
          %466 = dma.vmem_to_hbm [thread:$0]  %s464, 128, %s461, %s450
        $region56: #{tpu_custom_call.1} parent=39 // pred_fallthru
          _
      $region40: #{tpu_custom_call.1} parent=5 // pred_fallthru
        _
      %p467 = scmp.le.s32.totalorder 2, %s18
      // Predicated region
      $region57: #{tpu_custom_call.1} parent=5 // pred_check
        %p468 = pneg %p467
      $region58: #{tpu_custom_call.1} parent=5 // pred_check_branch
        %470 = sbr.rel (%p468) target = $region60
      $region59: #{tpu_custom_call.1} parent=5 // pred_region
        %s471 = ssub.s32 %s18, 2
        // Predicated region
        $region61: #{tpu_custom_call.1} parent=59 // pred_check
          %p472 = pneg %p157
        $region62: #{tpu_custom_call.1} parent=59 // pred_check_branch
          %474 = sbr.rel (%p472) target = $region64
        $region63: #{tpu_custom_call.1} parent=59 // pred_region
          %s475 = sand.u32 %s142, 1
          %s476 = scalar_lea.sflag [#allocation4], %s475
          %s477 = sand.u32 %s142, 1
          %s478 = smul.addr %s477, 8
          %s479 = scalar_lea.vmem [#allocation8], %s478
          %480 = dma.done %s476, 128
        $region64: #{tpu_custom_call.1} parent=59 // pred_fallthru
          _
      $region60: #{tpu_custom_call.1} parent=5 // pred_fallthru
        _
    $region6: #{tpu_custom_call.1} parent=1 // loop_footer
      %s22 = sadd.s32 1, %s18
    $region7: #{tpu_custom_call.1} parent=1 // loop_footer_branch
      %17 = sbr.rel target = $region3
    $region8: #{tpu_custom_call.1} parent=1 // loop_exit
      _
    %481 = vsyncpa [#allocation3], 1
    %s482 = scalar_lea.sflag [#allocation3], 1
    %483 = vsyncpa %s482, 1
    %484 = vsyncpa [#allocation6], 1
    %485 = vsyncpa [#allocation4], 1
    %s486 = scalar_lea.sflag [#allocation4], 1
    %487 = vsyncpa %s486, 1

// kernel: tpu_custom_call.1
$region0: #{tpu_custom_call.1}
  #allocation0 [shape = 'u32[]', space=smem, size = 0x4, offset = 0x4, fixed_abs, tag = 'smem constant byte address 0x4 - core index']
  #allocation1 [shape = 'u32[144,128]{1,0:T(1,128)}', space=vmem, size = 0x12000, scoped, tag = 'internal scratch']
  %s0 = inlined_call_operand.hbm [shape: f32[16,32], index: 0, kind: input, shape index: {}]
  %s1 = inlined_call_operand.hbm [shape: f32[32,128], index: 1, kind: input, shape index: {}]
  %s2 = inlined_call_operand.vmem [shape: f32[1,128], index: 2, kind: input, shape index: {}]
  %s3 = inlined_call_operand.hbm [shape: f32[128,128], index: 3, kind: input, shape index: {}]
  %s4 = inlined_call_operand.vmem [shape: f32[1,128], index: 4, kind: input, shape index: {}]
  %s5 = inlined_call_operand.hbm [shape: f32[16,128], index: 5, kind: output, shape index: {}]
  %s6 = sld [smem:[#allocation0]]
  $region65: #{tpu_custom_call.1} parent=0
    _
  %s8 = ssub.s32 1, %s6
  %s9 = scalar_select 0, %s8, %s6
  $region1: #{tpu_custom_call.1} parent=0
    #allocation2 [shape = 'u8[8192]{0}', space=vmem, size = 0x2000, scoped, tag = 'input window, operand 0']
    #allocation3 [shape = 's32[2]{0}', space=sflag, size = 0x8, scoped, tag = 'scoped memory for tpu_custom_call.1']
    #allocation4 [shape = 's32[2]{0}', space=sflag, size = 0x8, scoped, tag = 'scoped memory for tpu_custom_call.1']
    #allocation5 [shape = 'u8[16384]{0}', space=vmem, size = 0x4000, scoped, tag = 'input window, operand 1, single buffered']
    #allocation6 [shape = 's32[1]{0}', space=sflag, size = 0x4, scoped, tag = 'scoped memory for tpu_custom_call.1']
    #allocation7 [shape = 'u8[65536]{0}', space=vmem, size = 0x10000, scoped, tag = 'input window, operand 3, single buffered']
    #allocation8 [shape = 'u8[8192]{0}', space=vmem, size = 0x2000, scoped, tag = 'output window, operand 0']
    %10 = vsyncpa [#allocation3], 0
    %s11 = scalar_lea.sflag [#allocation3], 1
    %12 = vsyncpa %s11, 0
    %13 = vsyncpa [#allocation6], 0
    %14 = vsyncpa [#allocation4], 0
    %s15 = scalar_lea.sflag [#allocation4], 1
    %16 = vsyncpa %s15, 0
    loop: start=0, step=1, limit=4
    $region2: #{tpu_custom_call.1} parent=1 // loop_pre_header
      _
    $region3: #{tpu_custom_call.1} parent=1 // loop_header
      %s18 = sphi 0, %s22
      %p19 = scmp.ge.s32.totalorder %s18, 4
      %s28 = sphi 0, %s30
      %s31 = sphi 0, %s28
      %s32 = sphi 0, %s31
      %s48 = sphi 0, %s32
      %s52 = sphi 0, %s52
      %s54 = sphi 0, %s52
      %s55 = sphi 0, %s54
      %s69 = sphi 0, %s55
      %s73 = sphi 0, %s73
      %s75 = sphi 0, %s73
      %s76 = sphi 0, %s75
      %s90 = sphi 0, %s76
      %s94 = sphi 0, %s94
      %s96 = sphi 0, %s94
      %s97 = sphi 0, %s96
      %s111 = sphi 0, %s97
      %s115 = sphi 0, %s115
      %s117 = sphi 0, %s115
      %s118 = sphi 0, %s117
      %s132 = sphi 0, %s118
      %s138 = sphi 0, %s140
      %s141 = sphi 0, %s138
      %s142 = sphi 0, %s141
      %s158 = sphi 0, %s142
    $region4: #{tpu_custom_call.1} parent=1 // loop_header_branch
      %21 = sbr.rel (%p19) target = $region8
    $region5: #{tpu_custom_call.1} parent=1 // loop_body
      %s23 = ssub.s32 %s18, 1
      %s24 = ssub.s32 %s18, 2
      %s25 = sadd.s32 %s18, 1
      %s26 = ssub.s32 %s18, %s25
      %p27 = scmp.eq.s32.totalorder %s26, 0
      %s29 = sadd.s32 %s28, 1
      %s30 = scalar_select %p27, %s28, %s29
      %p33 = pneg %p27
      %p34 = scmp.eq.s32.totalorder %s18, 1
      %p35 = por %p33, %p34
      %p36 = scmp.ne.s32.totalorder %s28, %s31
      %p37 = scmp.eq.s32.totalorder %s18, 0
      %p38 = por %p36, %p37
      %p39 = scmp.ne.s32.totalorder %s28, %s31
      %p40 = scmp.eq.s32.totalorder %s23, 1
      %p41 = por %p39, %p40
      %p42 = scmp.ne.s32.totalorder %s31, %s32
      %p43 = scmp.eq.s32.totalorder %s23, 0
      %p44 = por %p42, %p43
      %p45 = scmp.ne.s32.totalorder %s31, %s32
      %p46 = scmp.eq.s32.totalorder %s24, 1
      %p47 = por %p45, %p46
      %p49 = scmp.ne.s32.totalorder %s32, %s48
      %p50 = scmp.eq.s32.totalorder %s24, 0
      %p51 = por %p49, %p50
      %s53 = sadd.s32 %s52, 1
      %p56 = scmp.eq.s32.totalorder %s18, 1
      %p57 = scmp.ne.s32.totalorder %s52, %s54
      %p58 = scmp.eq.s32.totalorder %s18, 0
      %p59 = por %p57, %p58
      %p60 = scmp.ne.s32.totalorder %s52, %s54
      %p61 = scmp.eq.s32.totalorder %s23, 1
      %p62 = por %p60, %p61
      %p63 = scmp.ne.s32.totalorder %s54, %s55
      %p64 = scmp.eq.s32.totalorder %s23, 0
      %p65 = por %p63, %p64
      %p66 = scmp.ne.s32.totalorder %s54, %s55
      %p67 = scmp.eq.s32.totalorder %s24, 1
      %p68 = por %p66, %p67
      %p70 = scmp.ne.s32.totalorder %s55, %s69
      %p71 = scmp.eq.s32.totalorder %s24, 0
      %p72 = por %p70, %p71
      %s74 = sadd.s32 %s73, 1
      %p77 = scmp.eq.s32.totalorder %s18, 1
      %p78 = scmp.ne.s32.totalorder %s73, %s75
      %p79 = scmp.eq.s32.totalorder %s18, 0
      %p80 = por %p78, %p79
      %p81 = scmp.ne.s32.totalorder %s73, %s75
      %p82 = scmp.eq.s32.totalorder %s23, 1
      %p83 = por %p81, %p82
      %p84 = scmp.ne.s32.totalorder %s75, %s76
      %p85 = scmp.eq.s32.totalorder %s23, 0
      %p86 = por %p84, %p85
      %p87 = scmp.ne.s32.totalorder %s75, %s76
      %p88 = scmp.eq.s32.totalorder %s24, 1
      %p89 = por %p87, %p88
      %p91 = scmp.ne.s32.totalorder %s76, %s90
      %p92 = scmp.eq.s32.totalorder %s24, 0
      %p93 = por %p91, %p92
      %s95 = sadd.s32 %s94, 1
      %p98 = scmp.eq.s32.totalorder %s18, 1
      %p99 = scmp.ne.s32.totalorder %s94, %s96
      %p100 = scmp.eq.s32.totalorder %s18, 0
      %p101 = por %p99, %p100
      %p102 = scmp.ne.s32.totalorder %s94, %s96
      %p103 = scmp.eq.s32.totalorder %s23, 1
      %p104 = por %p102, %p103
      %p105 = scmp.ne.s32.totalorder %s96, %s97
      %p106 = scmp.eq.s32.totalorder %s23, 0
      %p107 = por %p105, %p106
      %p108 = scmp.ne.s32.totalorder %s96, %s97
      %p109 = scmp.eq.s32.totalorder %s24, 1
      %p110 = por %p108, %p109
      %p112 = scmp.ne.s32.totalorder %s97, %s111
      %p113 = scmp.eq.s32.totalorder %s24, 0
      %p114 = por %p112, %p113
      %s116 = sadd.s32 %s115, 1
      %p119 = scmp.eq.s32.totalorder %s18, 1
      %p120 = scmp.ne.s32.totalorder %s115, %s117
      %p121 = scmp.eq.s32.totalorder %s18, 0
      %p122 = por %p120, %p121
      %p123 = scmp.ne.s32.totalorder %s115, %s117
      %p124 = scmp.eq.s32.totalorder %s23, 1
      %p125 = por %p123, %p124
      %p126 = scmp.ne.s32.totalorder %s117, %s118
      %p127 = scmp.eq.s32.totalorder %s23, 0
      %p128 = por %p126, %p127
      %p129 = scmp.ne.s32.totalorder %s117, %s118
      %p130 = scmp.eq.s32.totalorder %s24, 1
      %p131 = por %p129, %p130
      %p133 = scmp.ne.s32.totalorder %s118, %s132
      %p134 = scmp.eq.s32.totalorder %s24, 0
      %p135 = por %p133, %p134
      %s136 = ssub.s32 %s18, %s25
      %p137 = scmp.eq.s32.totalorder %s136, 0
      %s139 = sadd.s32 %s138, 1
      %s140 = scalar_select %p137, %s138, %s139
      %p143 = pneg %p137
      %p144 = scmp.eq.s32.totalorder %s18, 1
      %p145 = por %p143, %p144
      %p146 = scmp.ne.s32.totalorder %s138, %s141
      %p147 = scmp.eq.s32.totalorder %s18, 0
      %p148 = por %p146, %p147
      %p149 = scmp.ne.s32.totalorder %s138, %s141
      %p150 = scmp.eq.s32.totalorder %s23, 1
      %p151 = por %p149, %p150
      %p152 = scmp.ne.s32.totalorder %s141, %s142
      %p153 = scmp.eq.s32.totalorder %s23, 0
      %p154 = por %p152, %p153
      %p155 = scmp.ne.s32.totalorder %s141, %s142
      %p156 = scmp.eq.s32.totalorder %s24, 1
      %p157 = por %p155, %p156
      %p159 = scmp.ne.s32.totalorder %s142, %s158
      %p160 = scmp.eq.s32.totalorder %s24, 0
      %p161 = por %p159, %p160
      %p162 = scmp.le.s32.totalorder 1, %s18
      %p163 = scmp.lt.s32.totalorder %s18, 3
      %p164 = pnand %p162, %p163
      %p165 = pneg %p164
      // Predicated region
      $region9: #{tpu_custom_call.1} parent=5 // pred_check
        _
      $region10: #{tpu_custom_call.1} parent=5 // pred_check_branch
        %167 = sbr.rel (%p164) target = $region12
      $region11: #{tpu_custom_call.1} parent=5 // pred_region
        %s168 = ssub.s32 %s18, 1
        // Predicated region
        $region13: #{tpu_custom_call.1} parent=11 // pred_check
          %p169 = pneg %p65
        $region14: #{tpu_custom_call.1} parent=11 // pred_check_branch
          %171 = sbr.rel (%p169) target = $region16
        $region15: #{tpu_custom_call.1} parent=11 // pred_region
          %s173 = ssub.s32 512, 512
          %174 = vsyncadd [#allocation6], %s173
          %s175 = sshll.u32 [#allocation5], 4
          %s176 = int_to_ptr.vmem [resolvable:$true] %s175
          %181 = dma.hbm_to_vmem [thread:$0]  %s1, 512, %s176, [#allocation6], 128, 128, 8
        $region16: #{tpu_custom_call.1} parent=11 // pred_fallthru
          _
        // Predicated region
        $region17: #{tpu_custom_call.1} parent=11 // pred_check
          %p182 = pneg %p86
        $region18: #{tpu_custom_call.1} parent=11 // pred_check_branch
          %184 = sbr.rel (%p182) target = $region20
        $region19: #{tpu_custom_call.1} parent=11 // pred_region
          _
        $region20: #{tpu_custom_call.1} parent=11 // pred_fallthru
          _
        // Predicated region
        $region21: #{tpu_custom_call.1} parent=11 // pred_check
          %p185 = pneg %p107
        $region22: #{tpu_custom_call.1} parent=11 // pred_check_branch
          %187 = sbr.rel (%p185) target = $region24
        $region23: #{tpu_custom_call.1} parent=11 // pred_region
          %s189 = ssub.s32 2048, 2048
          %190 = vsyncadd [#allocation6], %s189
          %s191 = sshll.u32 [#allocation7], 4
          %s192 = int_to_ptr.vmem [resolvable:$true] %s191
          %197 = dma.hbm_to_vmem [thread:$0]  %s3, 2048, %s192, [#allocation6], 128, 128, 8
        $region24: #{tpu_custom_call.1} parent=11 // pred_fallthru
          _
        // Predicated region
        $region25: #{tpu_custom_call.1} parent=11 // pred_check
          %p198 = pneg %p128
        $region26: #{tpu_custom_call.1} parent=11 // pred_check_branch
          %200 = sbr.rel (%p198) target = $region28
        $region27: #{tpu_custom_call.1} parent=11 // pred_region
          _
        $region28: #{tpu_custom_call.1} parent=11 // pred_fallthru
          _
      $region12: #{tpu_custom_call.1} parent=5 // pred_fallthru
        _
      %p201 = scmp.lt.s32.totalorder %s18, 2
      // Predicated region
      $region29: #{tpu_custom_call.1} parent=5 // pred_check
        %p202 = pneg %p201
      $region30: #{tpu_custom_call.1} parent=5 // pred_check_branch
        %204 = sbr.rel (%p202) target = $region32
      $region31: #{tpu_custom_call.1} parent=5 // pred_region
        // Predicated region
        $region33: #{tpu_custom_call.1} parent=31 // pred_check
          %p205 = pneg %p38
        $region34: #{tpu_custom_call.1} parent=31 // pred_check_branch
          %207 = sbr.rel (%p205) target = $region36
        $region35: #{tpu_custom_call.1} parent=31 // pred_region
          %s208 = sand.u32 %s28, 1
          %s209 = scalar_lea.sflag [#allocation3], %s208
          %s210 = sand.u32 %s28, 1
          %s211 = smul.addr %s210, 8
          %s212 = scalar_lea.vmem [#allocation2], %s211
          %s214 = ssub.s32 128, 128
          %215 = vsyncadd %s209, %s214
          %s216 = smul.addr %s18, 128
          %s217 = scalar_lea.hbm %s0, %s216
          %s219 = sshll.u32 %s212, 4
          %s220 = int_to_ptr.vmem [resolvable:$true] %s219
          %222 = dma.hbm_to_vmem [thread:$0]  %s217, 128, %s220, %s209
        $region36: #{tpu_custom_call.1} parent=31 // pred_fallthru
          _
      $region32: #{tpu_custom_call.1} parent=5 // pred_fallthru
        _
      %p223 = scmp.le.s32.totalorder 1, %s18
      %p224 = scmp.lt.s32.totalorder %s18, 3
      %p225 = pnand %p223, %p224
      %p226 = pneg %p225
      // Predicated region
      $region37: #{tpu_custom_call.1} parent=5 // pred_check
        _
      $region38: #{tpu_custom_call.1} parent=5 // pred_check_branch
        %228 = sbr.rel (%p225) target = $region40
      $region39: #{tpu_custom_call.1} parent=5 // pred_region
        %s229 = ssub.s32 %s18, 1
        %s230 = sand.u32 %s31, 1
        %s231 = scalar_lea.sflag [#allocation3], %s230
        %s232 = sand.u32 %s31, 1
        %s233 = smul.addr %s232, 8
        %s234 = scalar_lea.vmem [#allocation2], %s233
        // Predicated region
        $region41: #{tpu_custom_call.1} parent=39 // pred_check
          %p235 = pneg %p44
        $region42: #{tpu_custom_call.1} parent=39 // pred_check_branch
          %237 = sbr.rel (%p235) target = $region44
        $region43: #{tpu_custom_call.1} parent=39 // pred_region
          %238 = dma.done %s231, 128
        $region44: #{tpu_custom_call.1} parent=39 // pred_fallthru
          _
        // Predicated region
        $region45: #{tpu_custom_call.1} parent=39 // pred_check
          %p239 = pneg %p65
        $region46: #{tpu_custom_call.1} parent=39 // pred_check_branch
          %241 = sbr.rel (%p239) target = $region48
        $region47: #{tpu_custom_call.1} parent=39 // pred_region
          %242 = dma.done [#allocation6], 512
        $region48: #{tpu_custom_call.1} parent=39 // pred_fallthru
          _
        // Predicated region
        $region49: #{tpu_custom_call.1} parent=39 // pred_check
          %p243 = pneg %p107
        $region50: #{tpu_custom_call.1} parent=39 // pred_check_branch
          %245 = sbr.rel (%p243) target = $region52
        $region51: #{tpu_custom_call.1} parent=39 // pred_region
          %246 = dma.done [#allocation6], 2048
        $region52: #{tpu_custom_call.1} parent=39 // pred_fallthru
          _
        %s247 = sand.u32 %s31, 1
        %s248 = scalar_lea.sflag [#allocation3], %s247
        %s249 = sand.u32 %s31, 1
        %s250 = smul.addr %s249, 8
        %s251 = scalar_lea.vmem [#allocation2], %s250
        %p252 = pneg %p44
        %p253 = pneg %p41
        %p254 = pneg %p65
        %p255 = pneg %p62
        %p256 = pneg %p86
        %p257 = pneg %p83
        %p258 = pneg %p107
        %p259 = pneg %p104
        %p260 = pneg %p128
        %p261 = pneg %p125
        %p262 = pneg %p154
        %p263 = pneg %p151
        %s264 = sand.u32 %s141, 1
        %s265 = scalar_lea.sflag [#allocation4], %s264
        %s266 = sand.u32 %s141, 1
        %s267 = smul.addr %s266, 8
        %s268 = scalar_lea.vmem [#allocation8], %s267
        %v269 = vld [vmem:[%s234] sm:$0xff]
        %v270 = vld [vmem:[#allocation5] sm:$0xff]
        %v271 = vld [vmem:[#allocation5 + $0x8] sm:$0xff]
        %v272 = vld [vmem:[#allocation5 + $0x10] sm:$0xff]
        %v273 = vld [vmem:[#allocation5 + $0x18] sm:$0xff]
        %v274 = vld [vmem:[%s2] sm:$0x1]
        %v276 = vlaneseq
        %v277 = vshrl.u32 %v276, 7
        %v278 = vsub.s32 0, %v277
        %v279 = vrot.slane %v274, %v278
        %vm281 = vcmask 261120
        %v283 = vsel %vm281, %v269, 0
        %285 = vmatprep.subr.mxu0 0.0
        %286 = vmatpush1.msra.mxu0 %v270
        %287 = vmatprep.subr.mxu0 0.0
        %288 = vmatpush1.msra.mxu0 %v271
        %289 = vmatprep.subr.mxu0 0.0
        %290 = vmatpush1.msra.mxu0 %v272
        %291 = vmatprep.subr.mxu0 0.0
        %292 = vmatpush1.msra.mxu0 %v273
        %293 = vmatprep.subr.mxu0 0.0
        %294 = vmatpush1.msra.mxu0 0.0
        %295 = vmatprep.subr.mxu0 0.0
        %296 = vmatpush1.msra.mxu0 0.0
        %297 = vmatprep.subr.mxu0 0.0
        %298 = vmatpush1.msra.mxu0 0.0
        %299 = vmatprep.subr.mxu0 0.0
        %300 = vmatpush1.msra.mxu0 0.0
        %301 = vmatprep.subr.mxu0 0.0
        %302 = vmatpush1.msra.mxu0 0.0
        %303 = vmatprep.subr.mxu0 0.0
        %304 = vmatpush1.msra.mxu0 0.0
        %305 = vmatprep.subr.mxu0 0.0
        %306 = vmatpush1.msra.mxu0 0.0
        %307 = vmatprep.subr.mxu0 0.0
        %308 = vmatpush1.msra.mxu0 0.0
        %309 = vmatprep.subr.mxu0 0.0
        %310 = vmatpush1.msra.mxu0 0.0
        %311 = vmatprep.subr.mxu0 0.0
        %312 = vmatpush1.msra.mxu0 0.0
        %313 = vmatprep.subr.mxu0 0.0
        %314 = vmatpush1.msra.mxu0 0.0
        %315 = vmatprep.subr.mxu0 0.0
        %316 = vmatpush1.msra.mxu0 0.0
        %317 = vmatprep.subr.mxu0 0.0
        %318 = vmatpush1.msra.mxu0 0.0
        %319 = vmatprep.subr.mxu0 0.0
        %320 = vmatpush1.msra.mxu0 0.0
        %321 = vmatprep.subr.mxu0 0.0
        %322 = vmatpush1.msra.mxu0 0.0
        %323 = vmatprep.subr.mxu0 0.0
        %324 = vmatpush1.msra.mxu0 0.0
        %325 = vmatprep.subr.mxu0 0.0
        %326 = vmatpush1.msra.mxu0 0.0
        %327 = vmatprep.subr.mxu0 0.0
        %328 = vmatpush1.msra.mxu0 0.0
        %329 = vmatprep.subr.mxu0 0.0
        %330 = vmatpush1.msra.mxu0 0.0
        %331 = vmatprep.subr.mxu0 0.0
        %332 = vmatpush1.msra.mxu0 0.0
        %333 = vmatprep.subr.mxu0 0.0
        %334 = vmatpush1.msra.mxu0 0.0
        %335 = vmatprep.subr.mxu0 0.0
        %336 = vmatpush1.msra.mxu0 0.0
        %337 = vmatprep.subr.mxu0 0.0
        %338 = vmatpush1.msra.mxu0 0.0
        %339 = vmatprep.subr.mxu0 0.0
        %340 = vmatpush1.msra.mxu0 0.0
        %341 = vmatprep.subr.mxu0 0.0
        %342 = vmatpush1.msra.mxu0 0.0
        %343 = vmatprep.subr.mxu0 0.0
        %344 = vmatpush1.msra.mxu0 0.0
        %345 = vmatprep.subr.mxu0 0.0
        %346 = vmatpush1.msra.mxu0 0.0
        %347 = vmatprep.subr.mxu0 0.0
        %348 = vmatpush1.msra.mxu0 0.0
        %349 = vmatprep.mubr.f32.mxu0 0.0
        %350 = vmatmul.mubr.f32.gmra.mrb[0].mxu0 %v283
        %v351 = vpop.f32.mrb[0].mxu0
        %v352 = vadd.f32 %v279, %v351
        %v353 = vpop.f32.mrb[0].mxu0
        %354 = vdwg.mxu0
        %v355 = vld [vmem:[#allocation7] sm:$0xff]
        %v356 = vld [vmem:[#allocation7 + $0x8] sm:$0xff]
        %v357 = vld [vmem:[#allocation7 + $0x10] sm:$0xff]
        %v358 = vld [vmem:[#allocation7 + $0x18] sm:$0xff]
        %v359 = vld [vmem:[#allocation7 + $0x20] sm:$0xff]
        %v360 = vld [vmem:[#allocation7 + $0x28] sm:$0xff]
        %v361 = vld [vmem:[#allocation7 + $0x30] sm:$0xff]
        %v362 = vld [vmem:[#allocation7 + $0x38] sm:$0xff]
        %v363 = vld [vmem:[#allocation7 + $0x40] sm:$0xff]
        %v364 = vld [vmem:[#allocation7 + $0x48] sm:$0xff]
        %v365 = vld [vmem:[#allocation7 + $0x50] sm:$0xff]
        %v366 = vld [vmem:[#allocation7 + $0x58] sm:$0xff]
        %v367 = vld [vmem:[#allocation7 + $0x60] sm:$0xff]
        %v368 = vld [vmem:[#allocation7 + $0x68] sm:$0xff]
        %v369 = vld [vmem:[#allocation7 + $0x70] sm:$0xff]
        %v370 = vld [vmem:[#allocation7 + $0x78] sm:$0xff]
        %v371 = vld [vmem:[%s4] sm:$0x1]
        %v373 = vlaneseq
        %v374 = vshrl.u32 %v373, 7
        %v375 = vsub.s32 0, %v374
        %v376 = vrot.slane %v371, %v375
        %378 = vmatprep.subr.mxu0 0.0
        %379 = vmatpush1.msra.mxu0 %v355
        %380 = vmatprep.subr.mxu0 0.0
        %381 = vmatpush1.msra.mxu0 %v356
        %382 = vmatprep.subr.mxu0 0.0
        %383 = vmatpush1.msra.mxu0 %v357
        %384 = vmatprep.subr.mxu0 0.0
        %385 = vmatpush1.msra.mxu0 %v358
        %386 = vmatprep.subr.mxu0 0.0
        %387 = vmatpush1.msra.mxu0 %v359
        %388 = vmatprep.subr.mxu0 0.0
        %389 = vmatpush1.msra.mxu0 %v360
        %390 = vmatprep.subr.mxu0 0.0
        %391 = vmatpush1.msra.mxu0 %v361
        %392 = vmatprep.subr.mxu0 0.0
        %393 = vmatpush1.msra.mxu0 %v362
        %394 = vmatprep.subr.mxu0 0.0
        %395 = vmatpush1.msra.mxu0 %v363
        %396 = vmatprep.subr.mxu0 0.0
        %397 = vmatpush1.msra.mxu0 %v364
        %398 = vmatprep.subr.mxu0 0.0
        %399 = vmatpush1.msra.mxu0 %v365
        %400 = vmatprep.subr.mxu0 0.0
        %401 = vmatpush1.msra.mxu0 %v366
        %402 = vmatprep.subr.mxu0 0.0
        %403 = vmatpush1.msra.mxu0 %v367
        %404 = vmatprep.subr.mxu0 0.0
        %405 = vmatpush1.msra.mxu0 %v368
        %406 = vmatprep.subr.mxu0 0.0
        %407 = vmatpush1.msra.mxu0 %v369
        %408 = vmatprep.subr.mxu0 0.0
        %409 = vmatpush1.msra.mxu0 %v370
        %410 = vmatprep.subr.mxu0 0.0
        %411 = vmatpush1.msra.mxu0 0.0
        %412 = vmatprep.subr.mxu0 0.0
        %413 = vmatpush1.msra.mxu0 0.0
        %414 = vmatprep.subr.mxu0 0.0
        %415 = vmatpush1.msra.mxu0 0.0
        %416 = vmatprep.subr.mxu0 0.0
        %417 = vmatpush1.msra.mxu0 0.0
        %418 = vmatprep.subr.mxu0 0.0
        %419 = vmatpush1.msra.mxu0 0.0
        %420 = vmatprep.subr.mxu0 0.0
        %421 = vmatpush1.msra.mxu0 0.0
        %422 = vmatprep.subr.mxu0 0.0
        %423 = vmatpush1.msra.mxu0 0.0
        %424 = vmatprep.subr.mxu0 0.0
        %425 = vmatpush1.msra.mxu0 0.0
        %426 = vmatprep.subr.mxu0 0.0
        %427 = vmatpush1.msra.mxu0 0.0
        %428 = vmatprep.subr.mxu0 0.0
        %429 = vmatpush1.msra.mxu0 0.0
        %430 = vmatprep.subr.mxu0 0.0
        %431 = vmatpush1.msra.mxu0 0.0
        %432 = vmatprep.subr.mxu0 0.0
        %433 = vmatpush1.msra.mxu0 0.0
        %434 = vmatprep.subr.mxu0 0.0
        %435 = vmatpush1.msra.mxu0 0.0
        %436 = vmatprep.subr.mxu0 0.0
        %437 = vmatpush1.msra.mxu0 0.0
        %438 = vmatprep.subr.mxu0 0.0
        %439 = vmatpush1.msra.mxu0 0.0
        %440 = vmatprep.subr.mxu0 0.0
        %441 = vmatpush1.msra.mxu0 0.0
        %442 = vmatprep.mubr.f32.mxu0 0.0
        %443 = vmatmul.mubr.f32.gmra.mrb[0].mxu0 %v352
        %v444 = vpop.f32.mrb[0].mxu0
        %v445 = vadd.f32 %v376, %v444
        %v446 = vpop.f32.mrb[0].mxu0
        %447 = vdwg.mxu0
        %448 = vst [vmem:[%s268] sm:$0xff] %v445
        %s449 = sand.u32 %s141, 1
        %s450 = scalar_lea.sflag [#allocation4], %s449
        %s451 = sand.u32 %s141, 1
        %s452 = smul.addr %s451, 8
        %s453 = scalar_lea.vmem [#allocation8], %s452
        // Predicated region
        $region53: #{tpu_custom_call.1} parent=39 // pred_check
          %p454 = pneg %p151
        $region54: #{tpu_custom_call.1} parent=39 // pred_check_branch
          %456 = sbr.rel (%p454) target = $region56
        $region55: #{tpu_custom_call.1} parent=39 // pred_region
          %s458 = ssub.s32 128, 128
          %459 = vsyncadd %s450, %s458
          %s460 = smul.addr %s23, 128
          %s461 = scalar_lea.hbm %s5, %s460
          %s463 = sshll.u32 %s453, 4
          %s464 = int_to_ptr.vmem [resolvable:$true] %s463
          %466 = dma.vmem_to_hbm [thread:$0]  %s464, 128, %s461, %s450
        $region56: #{tpu_custom_call.1} parent=39 // pred_fallthru
          _
      $region40: #{tpu_custom_call.1} parent=5 // pred_fallthru
        _
      %p467 = scmp.le.s32.totalorder 2, %s18
      // Predicated region
      $region57: #{tpu_custom_call.1} parent=5 // pred_check
        %p468 = pneg %p467
      $region58: #{tpu_custom_call.1} parent=5 // pred_check_branch
        %470 = sbr.rel (%p468) target = $region60
      $region59: #{tpu_custom_call.1} parent=5 // pred_region
        %s471 = ssub.s32 %s18, 2
        // Predicated region
        $region61: #{tpu_custom_call.1} parent=59 // pred_check
          %p472 = pneg %p157
        $region62: #{tpu_custom_call.1} parent=59 // pred_check_branch
          %474 = sbr.rel (%p472) target = $region64
        $region63: #{tpu_custom_call.1} parent=59 // pred_region
          %s475 = sand.u32 %s142, 1
          %s476 = scalar_lea.sflag [#allocation4], %s475
          %s477 = sand.u32 %s142, 1
          %s478 = smul.addr %s477, 8
          %s479 = scalar_lea.vmem [#allocation8], %s478
          %480 = dma.done %s476, 128
        $region64: #{tpu_custom_call.1} parent=59 // pred_fallthru
          _
      $region60: #{tpu_custom_call.1} parent=5 // pred_fallthru
        _
    $region6: #{tpu_custom_call.1} parent=1 // loop_footer
      %s22 = sadd.s32 1, %s18
    $region7: #{tpu_custom_call.1} parent=1 // loop_footer_branch
      %17 = sbr.rel target = $region3
    $region8: #{tpu_custom_call.1} parent=1 // loop_exit
      _
    %481 = vsyncpa [#allocation3], 1
    %s482 = scalar_lea.sflag [#allocation3], 1
    %483 = vsyncpa %s482, 1
    %484 = vsyncpa [#allocation6], 1
    %485 = vsyncpa [#allocation4], 1
    %s486 = scalar_lea.sflag [#allocation4], 1
    %487 = vsyncpa %s486, 1

</llo_original>
